<compile_context>
chip_gen: v5e
topology: v5e:2x2
jax: 0.10.0
libtpu: 0.0.40
codegen_flags: <defaults>
</compile_context>

<pallas_src>
import functools

import jax
import jax.numpy as jnp
from jax import lax
from jax.experimental import pallas as pl
from jax.experimental.pallas import tpu as pltpu

EPS = 1e-5


def _round_up(x, m):
    return ((x + m - 1) // m) * m


def prenorm3d_kernel(x_ref, gamma_ref, beta_ref, w_ref, b_ref, o_ref,
                     normed_ref, *, d_real):
    j = pl.program_id(1)

    @pl.when(j == 0)
    def _():
        # --- LayerNorm in f32 over the real feature width D (two-pass var). ---
        x = x_ref[...].astype(jnp.float32)
        inv_d = jnp.float32(1.0 / d_real)
        mean = jnp.sum(x, axis=-1, keepdims=True) * inv_d   # padded cols are 0
        xc = x - mean
        if x_ref.shape[-1] != d_real:
            # Zero the padded feature columns so they don't perturb the variance.
            lane = lax.broadcasted_iota(jnp.int32, xc.shape, 1)
            xc = jnp.where(lane < d_real, xc, 0.0)
        var = jnp.sum(xc * xc, axis=-1, keepdims=True) * inv_d
        inv = lax.rsqrt(var + jnp.float32(EPS))
        normed = xc * inv * gamma_ref[...] + beta_ref[...]
        # Cache the normalized tile (bf16) and reuse it for every column tile.
        normed_ref[...] = normed.astype(normed_ref.dtype)

    # --- fn: Linear(D, D). bf16 operands on the MXU, f32 accumulation. ---
    y = jnp.dot(normed_ref[...], w_ref[...], preferred_element_type=jnp.float32)
    o_ref[...] = (y + b_ref[...]).astype(o_ref.dtype)


def prepare_prenorm3d_params(gamma, beta, w_t, b):
    """One-time parameter prep (call at init time, NOT per forward):
    pad the feature dim to a multiple of 128 and cast W^T to bf16."""
    D = gamma.shape[-1]
    Dp = _round_up(D, 128)
    pad = Dp - D
    gamma_p = jnp.pad(gamma.reshape(1, D).astype(jnp.float32), ((0, 0), (0, pad)))
    beta_p = jnp.pad(beta.reshape(1, D).astype(jnp.float32), ((0, 0), (0, pad)))
    b_p = jnp.pad(b.reshape(1, D).astype(jnp.float32), ((0, 0), (0, pad)))
    w_p = jnp.pad(w_t.astype(jnp.bfloat16), ((0, pad), (0, pad)))
    return gamma_p, beta_p, w_p, b_p


def prenorm3d(x, gamma_p, beta_p, w_p, b_p, *, tile_m=None, tile_n=None,
              out_dtype=None):
    """x: (B, N, D). Params from prepare_prenorm3d_params().
    Returns fn(LayerNorm(x)) with fn = Linear(D, D)."""
    B, N, D = x.shape
    M = B * N
    Dp = w_p.shape[0]
    out_dtype = x.dtype if out_dtype is None else out_dtype

    # Only the feature dim is (maybe) padded; ragged M is handled by a partial
    # last grid block -> no row padding and no output-row slicing.
    x2 = x.reshape(M, D)
    if Dp != D:
        x2 = jnp.pad(x2, ((0, 0), (0, Dp - D)))

    # Row tile: aim for >= ~1 MiB f32 tiles (256..1024 rows); keep >= 2 grid
    # steps when there is enough work so both v7x TensorCores get rows.
    if tile_m is None:
        tile_m = max(256, min(1024, _round_up((1 << 20) // (4 * Dp), 8)))
        if M > 512 and pl.cdiv(M, tile_m) < 2:
            tile_m = max(256, _round_up(pl.cdiv(M, 2), 8))
    tile_m = min(_round_up(tile_m, 8), _round_up(M, 8))

    # Column tile over W^T / output: whole width while the double-buffered bf16
    # weight is small; 512-wide (multiple of 256 for the MXU) once D is large
    # enough that weight residency eats VMEM (matters first on v7x's 64 MiB).
    if tile_n is None:
        tile_n = Dp if Dp <= 1024 else 512
    tile_n = min(_round_up(tile_n, 128), Dp)
    n_col = pl.cdiv(Dp, tile_n)
    whole_w = n_col == 1

    grid = (pl.cdiv(M, tile_m), n_col)

    in_itm = jnp.dtype(x.dtype).itemsize
    out_itm = jnp.dtype(out_dtype).itemsize
    vmem_need = (2 * tile_m * Dp * in_itm          # x tiles (double-buffered)
                 + 2 * tile_m * tile_n * out_itm   # out tiles
                 + 2 * Dp * tile_n * 2             # bf16 weight tiles
                 + 2 * 3 * Dp * 4                  # gamma / beta / bias
                 + tile_m * Dp * 2                 # normed bf16 scratch
                 + (2 << 20))                      # headroom
    try:
        vmem_cap = int(pltpu.get_tpu_info().vmem_capacity_bytes)
    except Exception:
        vmem_cap = 64 << 20                        # v7x per-core VMEM (smallest)
    vmem_limit = int(min(max(vmem_need, 8 << 20), (vmem_cap * 3) // 4))

    cost = pl.CostEstimate(
        flops=2 * M * Dp * Dp + 8 * M * Dp,
        transcendentals=M,                          # one rsqrt per row
        bytes_accessed=M * Dp * (in_itm + out_itm) + Dp * Dp * 2 + 3 * Dp * 4,
    )

    def build(single_buffer_consts):
        def const_spec(shape, index_map):
            if single_buffer_consts:
                return pl.BlockSpec(shape, index_map, pipeline_mode=pl.Buffered(1))
            return pl.BlockSpec(shape, index_map)

        # W / bias only have a grid-invariant index when not column-tiled.
        w_spec = const_spec if whole_w else pl.BlockSpec
        return pl.pallas_call(
            functools.partial(prenorm3d_kernel, d_real=D),
            out_shape=jax.ShapeDtypeStruct((M, Dp), out_dtype),
            grid_spec=pltpu.PrefetchScalarGridSpec(
                num_scalar_prefetch=0,
                grid=grid,
                in_specs=[
                    pl.BlockSpec((tile_m, Dp), lambda i, j: (i, 0)),   # x rows
                    const_spec((1, Dp), lambda i, j: (0, 0)),          # gamma
                    const_spec((1, Dp), lambda i, j: (0, 0)),          # beta
                    w_spec((Dp, tile_n), lambda i, j: (0, j)),         # W^T (bf16)
                    w_spec((1, tile_n), lambda i, j: (0, j)),          # bias
                ],
                out_specs=pl.BlockSpec((tile_m, tile_n), lambda i, j: (i, j)),
                scratch_shapes=[pltpu.VMEM((tile_m, Dp), jnp.bfloat16)],
            ),
            compiler_params=pltpu.CompilerParams(
                dimension_semantics=("parallel", "arbitrary"),
                vmem_limit_bytes=vmem_limit),
            cost_estimate=cost,
        )

    try:
        out = build(True)(x2, gamma_p, beta_p, w_p, b_p)
    except Exception:
        # pipeline_mode=pl.Buffered(1) not supported by this jax build; fall
        # back to default double-buffering of the constant operands.
        out = build(False)(x2, gamma_p, beta_p, w_p, b_p)

    if Dp != D:
        out = out[:, :D]
    return out.reshape(B, N, D)


def prenorm3d_ref(x, gamma, beta, w_t, b):
    mean = jnp.mean(x, axis=-1, keepdims=True)
    var = jnp.mean((x - mean) ** 2, axis=-1, keepdims=True)
    normed = (x - mean) * lax.rsqrt(var + EPS) * gamma + beta
    return normed @ w_t + b


if __name__ == "__main__":
    key = jax.random.PRNGKey(0)

    def run_case(B, N, D, *, tile_m=None, tile_n=None, seed_offset=0):
        kx, kw, kb = jax.random.split(jax.random.fold_in(key, seed_offset), 3)
        x = jax.random.normal(kx, (B, N, D), dtype=jnp.float32)
        gamma = jnp.ones((D,), jnp.float32)       # PyTorch LayerNorm defaults
        beta = jnp.zeros((D,), jnp.float32)
        # fn = Linear(D, D); PyTorch computes y = x @ W.T + b with W (out, in).
        w = jax.random.normal(kw, (D, D), dtype=jnp.float32) * 0.05
        b = jax.random.normal(kb, (D,), dtype=jnp.float32) * 0.05
        w_t = w.T
        params = prepare_prenorm3d_params(gamma, beta, w_t, b)  # one-time prep
        out = jax.block_until_ready(
            prenorm3d(x, *params, tile_m=tile_m, tile_n=tile_n))
        ref = prenorm3d_ref(x, gamma, beta, w_t, b.reshape(1, 1, D))
        assert out.shape == (B, N, D)
        assert bool(jnp.all(jnp.isfinite(out))), "non-finite values leaked"
        # bf16 matmul operands with f32 accumulation -> loose tolerance.
        assert jnp.allclose(out, ref, atol=3e-2, rtol=3e-2), \
            f"mismatch vs reference for shape {(B, N, D)}"

    # Small demo shape (D padded 32->128, single column tile, single row tile).
    run_case(2, 8, 32)
    # Ragged rows (partial last block) + forced column tiling of W, with
    # D % 128 == 0 so no feature padding and no output slicing.
    run_case(2, 10, 256, tile_m=8, tile_n=128, seed_offset=1)

    print("KERNEL_OK")
</pallas_src>

<mosaic_0001>
module attributes {stable_mosaic.version = 11 : i64} {
  func.func @prenorm3d_kernel(%arg0: i32, %arg1: i32, %arg2: memref<16x128xf32, #tpu.memory_space<vmem>>, %arg3: memref<1x128xf32, #tpu.memory_space<vmem>>, %arg4: memref<1x128xf32, #tpu.memory_space<vmem>>, %arg5: memref<128x128xbf16, #tpu.memory_space<vmem>>, %arg6: memref<1x128xf32, #tpu.memory_space<vmem>>, %arg7: memref<16x128xf32, #tpu.memory_space<vmem>>, %arg8: memref<16x128xbf16, #tpu.memory_space<vmem>>) attributes {dimension_semantics = [#tpu.dimension_semantics<parallel>, #tpu.dimension_semantics<arbitrary>], iteration_bounds = array<i64: 1, 1>, scalar_prefetch = 0 : i64, scratch_operands = 1 : i64, tpu.core_type = #tpu.core_type<tc>, window_params = [{transform_indices = @transform_0, window_bounds = array<i64: 16, 128>}, {pipeline_mode = #tpu.pipeline_mode<synchronous>, transform_indices = @transform_1, window_bounds = array<i64: 1, 128>}, {pipeline_mode = #tpu.pipeline_mode<synchronous>, transform_indices = @transform_2, window_bounds = array<i64: 1, 128>}, {pipeline_mode = #tpu.pipeline_mode<synchronous>, transform_indices = @transform_3, window_bounds = array<i64: 128, 128>}, {pipeline_mode = #tpu.pipeline_mode<synchronous>, transform_indices = @transform_4, window_bounds = array<i64: 1, 128>}, {transform_indices = @transform_5, window_bounds = array<i64: 16, 128>}]} {
    %c0_i32 = arith.constant 0 : i32
    %0 = arith.cmpi eq, %arg1, %c0_i32 : i32
    %1 = arith.extui %0 : i1 to i32
    %c0_i32_0 = arith.constant 0 : i32
    %2 = arith.cmpi ne, %1, %c0_i32_0 : i32
    scf.if %2 {
      %c0_8 = arith.constant 0 : index
      %c0_9 = arith.constant 0 : index
      %10 = vector.load %arg2[%c0_8, %c0_9] : memref<16x128xf32, #tpu.memory_space<vmem>>, vector<16x128xf32>
      %cst_10 = arith.constant dense<0.000000e+00> : vector<16xf32>
      %11 = vector.multi_reduction <add>, %10, %cst_10 [1] : vector<16x128xf32> to vector<16xf32>
      %12 = vector.shape_cast %11 : vector<16xf32> to vector<16x1xf32>
      %cst_11 = arith.constant 3.125000e-02 : f32
      %13 = vector.broadcast %cst_11 : f32 to vector<16x1xf32>
      %14 = arith.mulf %12, %13 : vector<16x1xf32>
      %15 = vector.broadcast %14 : vector<16x1xf32> to vector<16x128xf32>
      %16 = arith.subf %10, %15 : vector<16x128xf32>
      %17 = tpu.iota {dimensions = array<i32: 1>} : vector<16x128xi32>
      %c32_i32 = arith.constant 32 : i32
      %18 = vector.broadcast %c32_i32 : i32 to vector<16x128xi32>
      %19 = arith.cmpi slt, %17, %18 : vector<16x128xi32>
      %cst_12 = arith.constant 0.000000e+00 : f32
      %20 = vector.broadcast %cst_12 : f32 to vector<16x128xf32>
      %21 = arith.select %19, %16, %20 : vector<16x128xi1>, vector<16x128xf32>
      %22 = arith.mulf %21, %21 : vector<16x128xf32>
      %cst_13 = arith.constant dense<0.000000e+00> : vector<16xf32>
      %23 = vector.multi_reduction <add>, %22, %cst_13 [1] : vector<16x128xf32> to vector<16xf32>
      %24 = vector.shape_cast %23 : vector<16xf32> to vector<16x1xf32>
      %cst_14 = arith.constant 3.125000e-02 : f32
      %25 = vector.broadcast %cst_14 : f32 to vector<16x1xf32>
      %26 = arith.mulf %24, %25 : vector<16x1xf32>
      %cst_15 = arith.constant 9.99999974E-6 : f32
      %27 = vector.broadcast %cst_15 : f32 to vector<16x1xf32>
      %28 = arith.addf %26, %27 : vector<16x1xf32>
      %29 = math.rsqrt %28 : vector<16x1xf32>
      %30 = vector.broadcast %29 : vector<16x1xf32> to vector<16x128xf32>
      %31 = arith.mulf %21, %30 : vector<16x128xf32>
      %c0_16 = arith.constant 0 : index
      %c0_17 = arith.constant 0 : index
      %32 = vector.load %arg3[%c0_16, %c0_17] : memref<1x128xf32, #tpu.memory_space<vmem>>, vector<1x128xf32>
      %33 = vector.broadcast %32 : vector<1x128xf32> to vector<16x128xf32>
      %34 = arith.mulf %31, %33 : vector<16x128xf32>
      %c0_18 = arith.constant 0 : index
      %c0_19 = arith.constant 0 : index
      %35 = vector.load %arg4[%c0_18, %c0_19] : memref<1x128xf32, #tpu.memory_space<vmem>>, vector<1x128xf32>
      %36 = vector.broadcast %35 : vector<1x128xf32> to vector<16x128xf32>
      %37 = arith.addf %34, %36 : vector<16x128xf32>
      %38 = arith.truncf %37 : vector<16x128xf32> to vector<16x128xbf16>
      %c0_20 = arith.constant 0 : index
      %c0_21 = arith.constant 0 : index
      %39 = vector.load %arg8[%c0_20, %c0_21] : memref<16x128xbf16, #tpu.memory_space<vmem>>, vector<16x128xbf16>
      tpu.vector_store %arg8[%c0_20, %c0_21], %38 {strides = array<i32>} : memref<16x128xbf16, #tpu.memory_space<vmem>>, vector<16x128xbf16>,
    } else {
    }
    %c0 = arith.constant 0 : index
    %c0_1 = arith.constant 0 : index
    %3 = vector.load %arg8[%c0, %c0_1] : memref<16x128xbf16, #tpu.memory_space<vmem>>, vector<16x128xbf16>
    %c0_2 = arith.constant 0 : index
    %c0_3 = arith.constant 0 : index
    %4 = vector.load %arg5[%c0_2, %c0_3] : memref<128x128xbf16, #tpu.memory_space<vmem>>, vector<128x128xbf16>
    %cst = arith.constant dense<0.000000e+00> : vector<16x128xf32>
    %5 = tpu.matmul %3, %4, %cst {dimension_numbers = #tpu.dot_dimension_numbers<[1], [0], [0], [1], [0, 0, 1, 1], [], []>} : vector<16x128xbf16>, vector<128x128xbf16>, vector<16x128xf32> -> vector<16x128xf32>
    %c0_4 = arith.constant 0 : index
    %c0_5 = arith.constant 0 : index
    %6 = vector.load %arg6[%c0_4, %c0_5] : memref<1x128xf32, #tpu.memory_space<vmem>>, vector<1x128xf32>
    %7 = vector.broadcast %6 : vector<1x128xf32> to vector<16x128xf32>
    %8 = arith.addf %5, %7 : vector<16x128xf32>
    %c0_6 = arith.constant 0 : index
    %c0_7 = arith.constant 0 : index
    %9 = vector.load %arg7[%c0_6, %c0_7] : memref<16x128xf32, #tpu.memory_space<vmem>>, vector<16x128xf32>
    tpu.vector_store %arg7[%c0_6, %c0_7], %8 {strides = array<i32>} : memref<16x128xf32, #tpu.memory_space<vmem>>, vector<16x128xf32>,
    return
  }
  func.func @transform_0(%arg0: i32, %arg1: i32) -> (i32, i32) {
    %c0_i32 = arith.constant 0 : i32
    %c0_i32_0 = arith.constant 0 : i32
    return %arg0, %c0_i32 : i32, i32
  }
  func.func @transform_1(%arg0: i32, %arg1: i32) -> (i32, i32) {
    %c0_i32 = arith.constant 0 : i32
    %c0_i32_0 = arith.constant 0 : i32
    %c0_i32_1 = arith.constant 0 : i32
    return %c0_i32, %c0_i32_0 : i32, i32
  }
  func.func @transform_2(%arg0: i32, %arg1: i32) -> (i32, i32) {
    %c0_i32 = arith.constant 0 : i32
    %c0_i32_0 = arith.constant 0 : i32
    %c0_i32_1 = arith.constant 0 : i32
    return %c0_i32, %c0_i32_0 : i32, i32
  }
  func.func @transform_3(%arg0: i32, %arg1: i32) -> (i32, i32) {
    %c0_i32 = arith.constant 0 : i32
    %c0_i32_0 = arith.constant 0 : i32
    return %c0_i32, %arg1 : i32, i32
  }
  func.func @transform_4(%arg0: i32, %arg1: i32) -> (i32, i32) {
    %c0_i32 = arith.constant 0 : i32
    %c0_i32_0 = arith.constant 0 : i32
    return %c0_i32, %arg1 : i32, i32
  }
  func.func @transform_5(%arg0: i32, %arg1: i32) -> (i32, i32) {
    %c0_i32 = arith.constant 0 : i32
    return %arg0, %arg1 : i32, i32
  }
}

module attributes {stable_mosaic.version = 11 : i64} {
  func.func @prenorm3d_kernel(%arg0: i32, %arg1: i32, %arg2: memref<16x128xf32, #tpu.memory_space<vmem>>, %arg3: memref<1x128xf32, #tpu.memory_space<vmem>>, %arg4: memref<1x128xf32, #tpu.memory_space<vmem>>, %arg5: memref<128x128xbf16, #tpu.memory_space<vmem>>, %arg6: memref<1x128xf32, #tpu.memory_space<vmem>>, %arg7: memref<16x128xf32, #tpu.memory_space<vmem>>, %arg8: memref<16x128xbf16, #tpu.memory_space<vmem>>) attributes {dimension_semantics = [#tpu.dimension_semantics<parallel>, #tpu.dimension_semantics<arbitrary>], iteration_bounds = array<i64: 1, 1>, scalar_prefetch = 0 : i64, scratch_operands = 1 : i64, tpu.core_type = #tpu.core_type<tc>, window_params = [{transform_indices = @transform_0, window_bounds = array<i64: 16, 128>}, {pipeline_mode = #tpu.pipeline_mode<synchronous>, transform_indices = @transform_1, window_bounds = array<i64: 1, 128>}, {pipeline_mode = #tpu.pipeline_mode<synchronous>, transform_indices = @transform_2, window_bounds = array<i64: 1, 128>}, {transform_indices = @transform_3, window_bounds = array<i64: 128, 128>}, {transform_indices = @transform_4, window_bounds = array<i64: 1, 128>}, {transform_indices = @transform_5, window_bounds = array<i64: 16, 128>}]} {
    %c0_i32 = arith.constant 0 : i32
    %0 = arith.cmpi eq, %arg1, %c0_i32 : i32
    %1 = arith.extui %0 : i1 to i32
    %c0_i32_0 = arith.constant 0 : i32
    %2 = arith.cmpi ne, %1, %c0_i32_0 : i32
    scf.if %2 {
      %c0_8 = arith.constant 0 : index
      %c0_9 = arith.constant 0 : index
      %10 = vector.load %arg2[%c0_8, %c0_9] : memref<16x128xf32, #tpu.memory_space<vmem>>, vector<16x128xf32>
      %cst_10 = arith.constant dense<0.000000e+00> : vector<16xf32>
      %11 = vector.multi_reduction <add>, %10, %cst_10 [1] : vector<16x128xf32> to vector<16xf32>
      %12 = vector.shape_cast %11 : vector<16xf32> to vector<16x1xf32>
      %cst_11 = arith.constant 3.125000e-02 : f32
      %13 = vector.broadcast %cst_11 : f32 to vector<16x1xf32>
      %14 = arith.mulf %12, %13 : vector<16x1xf32>
      %15 = vector.broadcast %14 : vector<16x1xf32> to vector<16x128xf32>
      %16 = arith.subf %10, %15 : vector<16x128xf32>
      %17 = tpu.iota {dimensions = array<i32: 1>} : vector<16x128xi32>
      %c32_i32 = arith.constant 32 : i32
      %18 = vector.broadcast %c32_i32 : i32 to vector<16x128xi32>
      %19 = arith.cmpi slt, %17, %18 : vector<16x128xi32>
      %cst_12 = arith.constant 0.000000e+00 : f32
      %20 = vector.broadcast %cst_12 : f32 to vector<16x128xf32>
      %21 = arith.select %19, %16, %20 : vector<16x128xi1>, vector<16x128xf32>
      %22 = arith.mulf %21, %21 : vector<16x128xf32>
      %cst_13 = arith.constant dense<0.000000e+00> : vector<16xf32>
      %23 = vector.multi_reduction <add>, %22, %cst_13 [1] : vector<16x128xf32> to vector<16xf32>
      %24 = vector.shape_cast %23 : vector<16xf32> to vector<16x1xf32>
      %cst_14 = arith.constant 3.125000e-02 : f32
      %25 = vector.broadcast %cst_14 : f32 to vector<16x1xf32>
      %26 = arith.mulf %24, %25 : vector<16x1xf32>
      %cst_15 = arith.constant 9.99999974E-6 : f32
      %27 = vector.broadcast %cst_15 : f32 to vector<16x1xf32>
      %28 = arith.addf %26, %27 : vector<16x1xf32>
      %29 = math.rsqrt %28 : vector<16x1xf32>
      %30 = vector.broadcast %29 : vector<16x1xf32> to vector<16x128xf32>
      %31 = arith.mulf %21, %30 : vector<16x128xf32>
      %c0_16 = arith.constant 0 : index
      %c0_17 = arith.constant 0 : index
      %32 = vector.load %arg3[%c0_16, %c0_17] : memref<1x128xf32, #tpu.memory_space<vmem>>, vector<1x128xf32>
      %33 = vector.broadcast %32 : vector<1x128xf32> to vector<16x128xf32>
      %34 = arith.mulf %31, %33 : vector<16x128xf32>
      %c0_18 = arith.constant 0 : index
      %c0_19 = arith.constant 0 : index
      %35 = vector.load %arg4[%c0_18, %c0_19] : memref<1x128xf32, #tpu.memory_space<vmem>>, vector<1x128xf32>
      %36 = vector.broadcast %35 : vector<1x128xf32> to vector<16x128xf32>
      %37 = arith.addf %34, %36 : vector<16x128xf32>
      %38 = arith.truncf %37 : vector<16x128xf32> to vector<16x128xbf16>
      %c0_20 = arith.constant 0 : index
      %c0_21 = arith.constant 0 : index
      %39 = vector.load %arg8[%c0_20, %c0_21] : memref<16x128xbf16, #tpu.memory_space<vmem>>, vector<16x128xbf16>
      tpu.vector_store %arg8[%c0_20, %c0_21], %38 {strides = array<i32>} : memref<16x128xbf16, #tpu.memory_space<vmem>>, vector<16x128xbf16>,
    } else {
    }
    %c0 = arith.constant 0 : index
    %c0_1 = arith.constant 0 : index
    %3 = vector.load %arg8[%c0, %c0_1] : memref<16x128xbf16, #tpu.memory_space<vmem>>, vector<16x128xbf16>
    %c0_2 = arith.constant 0 : index
    %c0_3 = arith.constant 0 : index
    %4 = vector.load %arg5[%c0_2, %c0_3] : memref<128x128xbf16, #tpu.memory_space<vmem>>, vector<128x128xbf16>
    %cst = arith.constant dense<0.000000e+00> : vector<16x128xf32>
    %5 = tpu.matmul %3, %4, %cst {dimension_numbers = #tpu.dot_dimension_numbers<[1], [0], [0], [1], [0, 0, 1, 1], [], []>} : vector<16x128xbf16>, vector<128x128xbf16>, vector<16x128xf32> -> vector<16x128xf32>
    %c0_4 = arith.constant 0 : index
    %c0_5 = arith.constant 0 : index
    %6 = vector.load %arg6[%c0_4, %c0_5] : memref<1x128xf32, #tpu.memory_space<vmem>>, vector<1x128xf32>
    %7 = vector.broadcast %6 : vector<1x128xf32> to vector<16x128xf32>
    %8 = arith.addf %5, %7 : vector<16x128xf32>
    %c0_6 = arith.constant 0 : index
    %c0_7 = arith.constant 0 : index
    %9 = vector.load %arg7[%c0_6, %c0_7] : memref<16x128xf32, #tpu.memory_space<vmem>>, vector<16x128xf32>
    tpu.vector_store %arg7[%c0_6, %c0_7], %8 {strides = array<i32>} : memref<16x128xf32, #tpu.memory_space<vmem>>, vector<16x128xf32>,
    return
  }
  func.func @transform_0(%arg0: i32, %arg1: i32) -> (i32, i32) {
    %c0_i32 = arith.constant 0 : i32
    %c0_i32_0 = arith.constant 0 : i32
    return %arg0, %c0_i32 : i32, i32
  }
  func.func @transform_1(%arg0: i32, %arg1: i32) -> (i32, i32) {
    %c0_i32 = arith.constant 0 : i32
    %c0_i32_0 = arith.constant 0 : i32
    %c0_i32_1 = arith.constant 0 : i32
    return %c0_i32, %c0_i32_0 : i32, i32
  }
  func.func @transform_2(%arg0: i32, %arg1: i32) -> (i32, i32) {
    %c0_i32 = arith.constant 0 : i32
    %c0_i32_0 = arith.constant 0 : i32
    %c0_i32_1 = arith.constant 0 : i32
    return %c0_i32, %c0_i32_0 : i32, i32
  }
  func.func @transform_3(%arg0: i32, %arg1: i32) -> (i32, i32) {
    %c0_i32 = arith.constant 0 : i32
    %c0_i32_0 = arith.constant 0 : i32
    return %c0_i32, %arg1 : i32, i32
  }
  func.func @transform_4(%arg0: i32, %arg1: i32) -> (i32, i32) {
    %c0_i32 = arith.constant 0 : i32
    %c0_i32_0 = arith.constant 0 : i32
    return %c0_i32, %arg1 : i32, i32
  }
  func.func @transform_5(%arg0: i32, %arg1: i32) -> (i32, i32) {
    %c0_i32 = arith.constant 0 : i32
    return %arg0, %arg1 : i32, i32
  }
}

</mosaic_0001>

<llo_original>
// kernel: tpu_custom_call.1
$region0: #{tpu_custom_call.1}
  #allocation0 [shape = 'u32[]', space=smem, size = 0x4, offset = 0x4, fixed_abs, tag = 'smem constant byte address 0x4 - core index']
  #allocation1 [shape = 'u32[72,128]{1,0:T(1,128)}', space=vmem, size = 0x9000, scoped, tag = 'internal scratch']
  #allocation2 [shape = 'bf16[16,128]{1,0:T(8,128)(2,1)}', space=vmem, size = 0x1000, scoped, tag = 'scratch operand']
  %s0 = inlined_call_operand.hbm [shape: f32[16,128], index: 0, kind: input, shape index: {}]
  %s1 = inlined_call_operand.hbm [shape: f32[1,128], index: 1, kind: input, shape index: {}]
  %s2 = inlined_call_operand.vmem [shape: f32[1,128], index: 2, kind: input, shape index: {}]
  %s3 = inlined_call_operand.hbm [shape: bf16[128,128], index: 3, kind: input, shape index: {}]
  %s4 = inlined_call_operand.vmem [shape: f32[1,128], index: 4, kind: input, shape index: {}]
  %s5 = inlined_call_operand.hbm [shape: f32[16,128], index: 5, kind: output, shape index: {}]
  %s6 = sld [smem:[#allocation0]]
  $region46: #{tpu_custom_call.1} parent=0
    _
  %s8 = ssub.s32 1, %s6
  %s9 = scalar_select 0, %s8, %s6
  $region1: #{tpu_custom_call.1} parent=0
    #allocation3 [shape = 'u8[8192]{0}', space=vmem, size = 0x2000, scoped, tag = 'input window, operand 0, single buffered']
    #allocation4 [shape = 's32[1]{0}', space=sflag, size = 0x4, scoped, tag = 'scoped memory for tpu_custom_call.1']
    #allocation5 [shape = 's32[1]{0}', space=sflag, size = 0x4, scoped, tag = 'scoped memory for tpu_custom_call.1']
    #allocation6 [shape = 'u8[512]{0}', space=vmem, size = 0x400, scoped, tag = 'input window, operand 1, single buffered']
    #allocation7 [shape = 's32[1]{0}', space=sflag, size = 0x4, scoped, tag = 'scoped memory for tpu_custom_call.1']
    #allocation8 [shape = 'u8[32768]{0}', space=vmem, size = 0x8000, scoped, tag = 'input window, operand 3, single buffered']
    #allocation9 [shape = 'u8[8192]{0}', space=vmem, size = 0x2000, scoped, tag = 'output window, operand 0, single buffered']
    %10 = vsyncpa [#allocation4], 0
    %11 = vsyncpa [#allocation7], 0
    %12 = vsyncpa [#allocation5], 0
    // Predicated region
    $region2: #{tpu_custom_call.1} parent=1 // pred_check
      _
    $region3: #{tpu_custom_call.1} parent=1 // pred_check_branch
      %14 = sbr.rel (0) target = $region5
    $region4: #{tpu_custom_call.1} parent=1 // pred_region
      %16 = vsyncadd [#allocation4], 0
      %s17 = sshll.u32 %s0, 4
      %s18 = int_to_ptr.hbm [resolvable:$true] %s17
      %s19 = sshll.u32 [#allocation3], 4
      %s20 = int_to_ptr.vmem [resolvable:$true] %s19
      %25 = dma.hbm_to_vmem [thread:$0]  %s18, 256, %s20, [#allocation4], 128, 128, 8
    $region5: #{tpu_custom_call.1} parent=1 // pred_fallthru
      _
    // Predicated region
    $region6: #{tpu_custom_call.1} parent=1 // pred_check
      _
    $region7: #{tpu_custom_call.1} parent=1 // pred_check_branch
      %27 = sbr.rel (0) target = $region9
    $region8: #{tpu_custom_call.1} parent=1 // pred_region
      %29 = vsyncadd [#allocation7], 0
      %s31 = sshll.u32 %s1, 4
      %s32 = int_to_ptr.hbm [resolvable:$true] %s31
      %s33 = sshll.u32 [#allocation6], 4
      %s34 = int_to_ptr.vmem [resolvable:$true] %s33
      %36 = dma.hbm_to_vmem [thread:$0]  %s32, 16, %s34, [#allocation7]
    $region9: #{tpu_custom_call.1} parent=1 // pred_fallthru
      _
    // Predicated region
    $region10: #{tpu_custom_call.1} parent=1 // pred_check
      _
    $region11: #{tpu_custom_call.1} parent=1 // pred_check_branch
      %38 = sbr.rel (0) target = $region13
    $region12: #{tpu_custom_call.1} parent=1 // pred_region
      _
    $region13: #{tpu_custom_call.1} parent=1 // pred_fallthru
      _
    // Predicated region
    $region14: #{tpu_custom_call.1} parent=1 // pred_check
      _
    $region15: #{tpu_custom_call.1} parent=1 // pred_check_branch
      %40 = sbr.rel (0) target = $region17
    $region16: #{tpu_custom_call.1} parent=1 // pred_region
      %42 = vsyncadd [#allocation7], 0
      %s43 = sshll.u32 %s3, 4
      %s44 = int_to_ptr.hbm [resolvable:$true] %s43
      %s45 = sshll.u32 [#allocation8], 4
      %s46 = int_to_ptr.vmem [resolvable:$true] %s45
      %51 = dma.hbm_to_vmem [thread:$0]  %s44, 1024, %s46, [#allocation7], 64, 64, 4
    $region17: #{tpu_custom_call.1} parent=1 // pred_fallthru
      _
    // Predicated region
    $region18: #{tpu_custom_call.1} parent=1 // pred_check
      _
    $region19: #{tpu_custom_call.1} parent=1 // pred_check_branch
      %53 = sbr.rel (0) target = $region21
    $region20: #{tpu_custom_call.1} parent=1 // pred_region
      _
    $region21: #{tpu_custom_call.1} parent=1 // pred_fallthru
      _
    // Predicated region
    $region22: #{tpu_custom_call.1} parent=1 // pred_check
      _
    $region23: #{tpu_custom_call.1} parent=1 // pred_check_branch
      %55 = sbr.rel (0) target = $region25
    $region24: #{tpu_custom_call.1} parent=1 // pred_region
      %57 = dma.done [#allocation4], 256
    $region25: #{tpu_custom_call.1} parent=1 // pred_fallthru
      _
    // Predicated region
    $region26: #{tpu_custom_call.1} parent=1 // pred_check
      _
    $region27: #{tpu_custom_call.1} parent=1 // pred_check_branch
      %59 = sbr.rel (0) target = $region29
    $region28: #{tpu_custom_call.1} parent=1 // pred_region
      %61 = dma.done [#allocation7], 16
    $region29: #{tpu_custom_call.1} parent=1 // pred_fallthru
      _
    // Predicated region
    $region30: #{tpu_custom_call.1} parent=1 // pred_check
      _
    $region31: #{tpu_custom_call.1} parent=1 // pred_check_branch
      %63 = sbr.rel (0) target = $region33
    $region32: #{tpu_custom_call.1} parent=1 // pred_region
      %65 = dma.done [#allocation7], 1024
    $region33: #{tpu_custom_call.1} parent=1 // pred_fallthru
      _
    %p66 = scmp.eq.s32.totalorder 0, 0
    // Predicated region
    $region34: #{tpu_custom_call.1} parent=1 // pred_check
      %p67 = pneg %p66
    $region35: #{tpu_custom_call.1} parent=1 // pred_check_branch
      %69 = sbr.rel (%p67) target = $region37
    $region36: #{tpu_custom_call.1} parent=1 // pred_region
      %v70 = vld [vmem:[#allocation3] sm:$0xff]
      %v71 = vld [vmem:[#allocation3 + $0x8] sm:$0xff]
      %72 = vadd.xlane.f32.xlu0 %v70
      %v73 = vpop.xlane.xlu0 %72
      %74 = vadd.xlane.f32.xlu0 %v71
      %v75 = vpop.xlane.xlu0 %74
      %v76 = vmul.f32 %v73, 0.03125
      %v77 = vmul.f32 %v75, 0.03125
      %v78 = vsub.f32 %v70, %v76
      %v79 = vsub.f32 %v71, %v77
      %v80 = vlaneseq
      %v81 = vand.u32 %v80, 127
      %vm82 = vcmp.lt.s32.totalorder %v81, 32
      %v83 = vsel %vm82, %v78, 0.0
      %v84 = vsel %vm82, %v79, 0.0
      %v85 = vmul.f32 %v83, %v83
      %v86 = vmul.f32 %v84, %v84
      %87 = vadd.xlane.f32.xlu0 %v85
      %v88 = vpop.xlane.xlu0 %87
      %89 = vadd.xlane.f32.xlu0 %v86
      %v90 = vpop.xlane.xlu0 %89
      %v91 = vmul.f32 %v88, 0.03125
      %v92 = vmul.f32 %v90, 0.03125
      %v93 = vadd.f32 %v91, 1e-05
      %v94 = vadd.f32 %v92, 1e-05
      %v95 = vrsqrt.pop %v93
      %v96 = vmul.f32 %v95, %v93
      %v97 = vmul.f32 %v96, %v95
      %v98 = vmul.f32 0.5, %v97
      %v99 = vsub.f32 1.5, %v98
      %v100 = vmul.f32 %v95, %v99
      %vm101 = vweird.f32 %v93
      %vm102 = vweird.f32 %v95
      %vm103 = vmor %vm101, %vm102
      %v104 = vsel %vm103, %v95, %v100
      %v105 = vrsqrt.pop %v94
      %v106 = vmul.f32 %v105, %v94
      %v107 = vmul.f32 %v106, %v105
      %v108 = vmul.f32 0.5, %v107
      %v109 = vsub.f32 1.5, %v108
      %v110 = vmul.f32 %v105, %v109
      %vm111 = vweird.f32 %v94
      %vm112 = vweird.f32 %v105
      %vm113 = vmor %vm111, %vm112
      %v114 = vsel %vm113, %v105, %v110
      %v115 = vmul.f32 %v83, %v104
      %v116 = vmul.f32 %v84, %v114
      %v117 = vld [vmem:[#allocation6] sm:$0x1]
      %v119 = vperm.slane %v117, 0
      %v121 = vmul.f32 %v115, %v119
      %v122 = vmul.f32 %v116, %v119
      %v123 = vld [vmem:[%s2] sm:$0x1]
      %v125 = vperm.slane %v123, 0
      %v127 = vadd.f32 %v121, %v125
      %v128 = vadd.f32 %v122, %v125
      %v129 = vpack.c.bf16 %v127, %v127
      %v130 = vpack.c.bf16 %v128, %v128
      %131 = vst [vmem:[#allocation2] sm:$0xf] %v129
      %132 = vst [vmem:[#allocation2 + $0x4] sm:$0xf] %v130
    $region37: #{tpu_custom_call.1} parent=1 // pred_fallthru
      _
    %v133 = vld [vmem:[#allocation2] sm:$0xf]
    %v134 = vld [vmem:[#allocation2 + $0x4] sm:$0xf]
    %v135 = vld [vmem:[#allocation8] sm:$0xf]
    %v136 = vld [vmem:[#allocation8 + $0x4] sm:$0xf]
    %v137 = vld [vmem:[#allocation8 + $0x8] sm:$0xf]
    %v138 = vld [vmem:[#allocation8 + $0xc] sm:$0xf]
    %v139 = vld [vmem:[#allocation8 + $0x10] sm:$0xf]
    %v140 = vld [vmem:[#allocation8 + $0x14] sm:$0xf]
    %v141 = vld [vmem:[#allocation8 + $0x18] sm:$0xf]
    %v142 = vld [vmem:[#allocation8 + $0x1c] sm:$0xf]
    %v143 = vld [vmem:[#allocation8 + $0x20] sm:$0xf]
    %v144 = vld [vmem:[#allocation8 + $0x24] sm:$0xf]
    %v145 = vld [vmem:[#allocation8 + $0x28] sm:$0xf]
    %v146 = vld [vmem:[#allocation8 + $0x2c] sm:$0xf]
    %v147 = vld [vmem:[#allocation8 + $0x30] sm:$0xf]
    %v148 = vld [vmem:[#allocation8 + $0x34] sm:$0xf]
    %v149 = vld [vmem:[#allocation8 + $0x38] sm:$0xf]
    %v150 = vld [vmem:[#allocation8 + $0x3c] sm:$0xf]
    %v151 = vld [vmem:[%s4] sm:$0x1]
    %v153 = vperm.slane %v151, 0
    %v157 = vunpack.c.l.b16 %v133
    %v158 = vunpack.c.l.b16 %v134
    %v159 = vpack.c.b16 %v158, %v157
    %v177 = vunpack.c.l.b16 %v135
    %v178 = vunpack.c.l.b16 %v136
    %v179 = vunpack.c.l.b16 %v137
    %v180 = vunpack.c.l.b16 %v138
    %v181 = vunpack.c.l.b16 %v139
    %v182 = vunpack.c.l.b16 %v140
    %v183 = vunpack.c.l.b16 %v141
    %v184 = vunpack.c.l.b16 %v142
    %v185 = vunpack.c.l.b16 %v143
    %v186 = vunpack.c.l.b16 %v144
    %v187 = vunpack.c.l.b16 %v145
    %v188 = vunpack.c.l.b16 %v146
    %v189 = vunpack.c.l.b16 %v147
    %v190 = vunpack.c.l.b16 %v148
    %v191 = vunpack.c.l.b16 %v149
    %v192 = vunpack.c.l.b16 %v150
    %v193 = vpack.c.b16 %v178, %v177
    %v194 = vpack.c.b16 %v180, %v179
    %v195 = vpack.c.b16 %v182, %v181
    %v196 = vpack.c.b16 %v184, %v183
    %v197 = vpack.c.b16 %v186, %v185
    %v198 = vpack.c.b16 %v188, %v187
    %v199 = vpack.c.b16 %v190, %v189
    %v200 = vpack.c.b16 %v192, %v191
    %209 = vmatpush.bf16.msra.mxu0 %v200
    %210 = vmatpush.bf16.msra.mxu0 %v199
    %211 = vmatpush.bf16.msra.mxu0 %v198
    %212 = vmatpush.bf16.msra.mxu0 %v197
    %213 = vmatpush.bf16.msra.mxu0 %v196
    %214 = vmatpush.bf16.msra.mxu0 %v195
    %215 = vmatpush.bf16.msra.mxu0 %v194
    %216 = vmatpush.bf16.msra.mxu0 %v193
    %217 = vmatmul.bf16.gmra.mxu0 %v159
    %v218 = vpop.f32.mrf.mxu0
    %v219 = vadd.f32 %v153, %v218
    %v220 = vpop.f32.mrf.mxu0
    %v221 = vadd.f32 %v153, %v220
    %222 = vdwg.mxu0
    %223 = vst [vmem:[#allocation9] sm:$0xff] %v219
    %224 = vst [vmem:[#allocation9 + $0x8] sm:$0xff] %v221
    // Predicated region
    $region38: #{tpu_custom_call.1} parent=1 // pred_check
      _
    $region39: #{tpu_custom_call.1} parent=1 // pred_check_branch
      %226 = sbr.rel (0) target = $region41
    $region40: #{tpu_custom_call.1} parent=1 // pred_region
      %228 = vsyncadd [#allocation5], 0
      %s229 = sshll.u32 [#allocation9], 4
      %s230 = int_to_ptr.vmem [resolvable:$true] %s229
      %s231 = sshll.u32 %s5, 4
      %s232 = int_to_ptr.hbm [resolvable:$true] %s231
      %237 = dma.vmem_to_hbm [thread:$0]  %s230, 256, %s232, [#allocation5], 128, 128, 8
    $region41: #{tpu_custom_call.1} parent=1 // pred_fallthru
      _
    // Predicated region
    $region42: #{tpu_custom_call.1} parent=1 // pred_check
      _
    $region43: #{tpu_custom_call.1} parent=1 // pred_check_branch
      %239 = sbr.rel (0) target = $region45
    $region44: #{tpu_custom_call.1} parent=1 // pred_region
      %241 = dma.done [#allocation5], 256
    $region45: #{tpu_custom_call.1} parent=1 // pred_fallthru
      _
    %242 = vsyncpa [#allocation4], 1
    %243 = vsyncpa [#allocation7], 1
    %244 = vsyncpa [#allocation5], 1

// kernel: tpu_custom_call.1
$region0: #{tpu_custom_call.1}
  #allocation0 [shape = 'u32[]', space=smem, size = 0x4, offset = 0x4, fixed_abs, tag = 'smem constant byte address 0x4 - core index']
  #allocation1 [shape = 'u32[72,128]{1,0:T(1,128)}', space=vmem, size = 0x9000, scoped, tag = 'internal scratch']
  #allocation2 [shape = 'bf16[16,128]{1,0:T(8,128)(2,1)}', space=vmem, size = 0x1000, scoped, tag = 'scratch operand']
  %s0 = inlined_call_operand.hbm [shape: f32[16,128], index: 0, kind: input, shape index: {}]
  %s1 = inlined_call_operand.hbm [shape: f32[1,128], index: 1, kind: input, shape index: {}]
  %s2 = inlined_call_operand.vmem [shape: f32[1,128], index: 2, kind: input, shape index: {}]
  %s3 = inlined_call_operand.hbm [shape: bf16[128,128], index: 3, kind: input, shape index: {}]
  %s4 = inlined_call_operand.vmem [shape: f32[1,128], index: 4, kind: input, shape index: {}]
  %s5 = inlined_call_operand.hbm [shape: f32[16,128], index: 5, kind: output, shape index: {}]
  %s6 = sld [smem:[#allocation0]]
  $region46: #{tpu_custom_call.1} parent=0
    _
  %s8 = ssub.s32 1, %s6
  %s9 = scalar_select 0, %s8, %s6
  $region1: #{tpu_custom_call.1} parent=0
    #allocation3 [shape = 'u8[8192]{0}', space=vmem, size = 0x2000, scoped, tag = 'input window, operand 0, single buffered']
    #allocation4 [shape = 's32[1]{0}', space=sflag, size = 0x4, scoped, tag = 'scoped memory for tpu_custom_call.1']
    #allocation5 [shape = 's32[1]{0}', space=sflag, size = 0x4, scoped, tag = 'scoped memory for tpu_custom_call.1']
    #allocation6 [shape = 'u8[512]{0}', space=vmem, size = 0x400, scoped, tag = 'input window, operand 1, single buffered']
    #allocation7 [shape = 's32[1]{0}', space=sflag, size = 0x4, scoped, tag = 'scoped memory for tpu_custom_call.1']
    #allocation8 [shape = 'u8[32768]{0}', space=vmem, size = 0x8000, scoped, tag = 'input window, operand 3, single buffered']
    #allocation9 [shape = 'u8[8192]{0}', space=vmem, size = 0x2000, scoped, tag = 'output window, operand 0, single buffered']
    %10 = vsyncpa [#allocation4], 0
    %11 = vsyncpa [#allocation7], 0
    %12 = vsyncpa [#allocation5], 0
    // Predicated region
    $region2: #{tpu_custom_call.1} parent=1 // pred_check
      _
    $region3: #{tpu_custom_call.1} parent=1 // pred_check_branch
      %14 = sbr.rel (0) target = $region5
    $region4: #{tpu_custom_call.1} parent=1 // pred_region
      %16 = vsyncadd [#allocation4], 0
      %s17 = sshll.u32 %s0, 4
      %s18 = int_to_ptr.hbm [resolvable:$true] %s17
      %s19 = sshll.u32 [#allocation3], 4
      %s20 = int_to_ptr.vmem [resolvable:$true] %s19
      %25 = dma.hbm_to_vmem [thread:$0]  %s18, 256, %s20, [#allocation4], 128, 128, 8
    $region5: #{tpu_custom_call.1} parent=1 // pred_fallthru
      _
    // Predicated region
    $region6: #{tpu_custom_call.1} parent=1 // pred_check
      _
    $region7: #{tpu_custom_call.1} parent=1 // pred_check_branch
      %27 = sbr.rel (0) target = $region9
    $region8: #{tpu_custom_call.1} parent=1 // pred_region
      %29 = vsyncadd [#allocation7], 0
      %s31 = sshll.u32 %s1, 4
      %s32 = int_to_ptr.hbm [resolvable:$true] %s31
      %s33 = sshll.u32 [#allocation6], 4
      %s34 = int_to_ptr.vmem [resolvable:$true] %s33
      %36 = dma.hbm_to_vmem [thread:$0]  %s32, 16, %s34, [#allocation7]
    $region9: #{tpu_custom_call.1} parent=1 // pred_fallthru
      _
    // Predicated region
    $region10: #{tpu_custom_call.1} parent=1 // pred_check
      _
    $region11: #{tpu_custom_call.1} parent=1 // pred_check_branch
      %38 = sbr.rel (0) target = $region13
    $region12: #{tpu_custom_call.1} parent=1 // pred_region
      _
    $region13: #{tpu_custom_call.1} parent=1 // pred_fallthru
      _
    // Predicated region
    $region14: #{tpu_custom_call.1} parent=1 // pred_check
      _
    $region15: #{tpu_custom_call.1} parent=1 // pred_check_branch
      %40 = sbr.rel (0) target = $region17
    $region16: #{tpu_custom_call.1} parent=1 // pred_region
      %42 = vsyncadd [#allocation7], 0
      %s43 = sshll.u32 %s3, 4
      %s44 = int_to_ptr.hbm [resolvable:$true] %s43
      %s45 = sshll.u32 [#allocation8], 4
      %s46 = int_to_ptr.vmem [resolvable:$true] %s45
      %51 = dma.hbm_to_vmem [thread:$0]  %s44, 1024, %s46, [#allocation7], 64, 64, 4
    $region17: #{tpu_custom_call.1} parent=1 // pred_fallthru
      _
    // Predicated region
    $region18: #{tpu_custom_call.1} parent=1 // pred_check
      _
    $region19: #{tpu_custom_call.1} parent=1 // pred_check_branch
      %53 = sbr.rel (0) target = $region21
    $region20: #{tpu_custom_call.1} parent=1 // pred_region
      _
    $region21: #{tpu_custom_call.1} parent=1 // pred_fallthru
      _
    // Predicated region
    $region22: #{tpu_custom_call.1} parent=1 // pred_check
      _
    $region23: #{tpu_custom_call.1} parent=1 // pred_check_branch
      %55 = sbr.rel (0) target = $region25
    $region24: #{tpu_custom_call.1} parent=1 // pred_region
      %57 = dma.done [#allocation4], 256
    $region25: #{tpu_custom_call.1} parent=1 // pred_fallthru
      _
    // Predicated region
    $region26: #{tpu_custom_call.1} parent=1 // pred_check
      _
    $region27: #{tpu_custom_call.1} parent=1 // pred_check_branch
      %59 = sbr.rel (0) target = $region29
    $region28: #{tpu_custom_call.1} parent=1 // pred_region
      %61 = dma.done [#allocation7], 16
    $region29: #{tpu_custom_call.1} parent=1 // pred_fallthru
      _
    // Predicated region
    $region30: #{tpu_custom_call.1} parent=1 // pred_check
      _
    $region31: #{tpu_custom_call.1} parent=1 // pred_check_branch
      %63 = sbr.rel (0) target = $region33
    $region32: #{tpu_custom_call.1} parent=1 // pred_region
      %65 = dma.done [#allocation7], 1024
    $region33: #{tpu_custom_call.1} parent=1 // pred_fallthru
      _
    %p66 = scmp.eq.s32.totalorder 0, 0
    // Predicated region
    $region34: #{tpu_custom_call.1} parent=1 // pred_check
      %p67 = pneg %p66
    $region35: #{tpu_custom_call.1} parent=1 // pred_check_branch
      %69 = sbr.rel (%p67) target = $region37
    $region36: #{tpu_custom_call.1} parent=1 // pred_region
      %v70 = vld [vmem:[#allocation3] sm:$0xff]
      %v71 = vld [vmem:[#allocation3 + $0x8] sm:$0xff]
      %72 = vadd.xlane.f32.xlu0 %v70
      %v73 = vpop.xlane.xlu0 %72
      %74 = vadd.xlane.f32.xlu0 %v71
      %v75 = vpop.xlane.xlu0 %74
      %v76 = vmul.f32 %v73, 0.03125
      %v77 = vmul.f32 %v75, 0.03125
      %v78 = vsub.f32 %v70, %v76
      %v79 = vsub.f32 %v71, %v77
      %v80 = vlaneseq
      %v81 = vand.u32 %v80, 127
      %vm82 = vcmp.lt.s32.totalorder %v81, 32
      %v83 = vsel %vm82, %v78, 0.0
      %v84 = vsel %vm82, %v79, 0.0
      %v85 = vmul.f32 %v83, %v83
      %v86 = vmul.f32 %v84, %v84
      %87 = vadd.xlane.f32.xlu0 %v85
      %v88 = vpop.xlane.xlu0 %87
      %89 = vadd.xlane.f32.xlu0 %v86
      %v90 = vpop.xlane.xlu0 %89
      %v91 = vmul.f32 %v88, 0.03125
      %v92 = vmul.f32 %v90, 0.03125
      %v93 = vadd.f32 %v91, 1e-05
      %v94 = vadd.f32 %v92, 1e-05
      %v95 = vrsqrt.pop %v93
      %v96 = vmul.f32 %v95, %v93
      %v97 = vmul.f32 %v96, %v95
      %v98 = vmul.f32 0.5, %v97
      %v99 = vsub.f32 1.5, %v98
      %v100 = vmul.f32 %v95, %v99
      %vm101 = vweird.f32 %v93
      %vm102 = vweird.f32 %v95
      %vm103 = vmor %vm101, %vm102
      %v104 = vsel %vm103, %v95, %v100
      %v105 = vrsqrt.pop %v94
      %v106 = vmul.f32 %v105, %v94
      %v107 = vmul.f32 %v106, %v105
      %v108 = vmul.f32 0.5, %v107
      %v109 = vsub.f32 1.5, %v108
      %v110 = vmul.f32 %v105, %v109
      %vm111 = vweird.f32 %v94
      %vm112 = vweird.f32 %v105
      %vm113 = vmor %vm111, %vm112
      %v114 = vsel %vm113, %v105, %v110
      %v115 = vmul.f32 %v83, %v104
      %v116 = vmul.f32 %v84, %v114
      %v117 = vld [vmem:[#allocation6] sm:$0x1]
      %v119 = vperm.slane %v117, 0
      %v121 = vmul.f32 %v115, %v119
      %v122 = vmul.f32 %v116, %v119
      %v123 = vld [vmem:[%s2] sm:$0x1]
      %v125 = vperm.slane %v123, 0
      %v127 = vadd.f32 %v121, %v125
      %v128 = vadd.f32 %v122, %v125
      %v129 = vpack.c.bf16 %v127, %v127
      %v130 = vpack.c.bf16 %v128, %v128
      %131 = vst [vmem:[#allocation2] sm:$0xf] %v129
      %132 = vst [vmem:[#allocation2 + $0x4] sm:$0xf] %v130
    $region37: #{tpu_custom_call.1} parent=1 // pred_fallthru
      _
    %v133 = vld [vmem:[#allocation2] sm:$0xf]
    %v134 = vld [vmem:[#allocation2 + $0x4] sm:$0xf]
    %v135 = vld [vmem:[#allocation8] sm:$0xf]
    %v136 = vld [vmem:[#allocation8 + $0x4] sm:$0xf]
    %v137 = vld [vmem:[#allocation8 + $0x8] sm:$0xf]
    %v138 = vld [vmem:[#allocation8 + $0xc] sm:$0xf]
    %v139 = vld [vmem:[#allocation8 + $0x10] sm:$0xf]
    %v140 = vld [vmem:[#allocation8 + $0x14] sm:$0xf]
    %v141 = vld [vmem:[#allocation8 + $0x18] sm:$0xf]
    %v142 = vld [vmem:[#allocation8 + $0x1c] sm:$0xf]
    %v143 = vld [vmem:[#allocation8 + $0x20] sm:$0xf]
    %v144 = vld [vmem:[#allocation8 + $0x24] sm:$0xf]
    %v145 = vld [vmem:[#allocation8 + $0x28] sm:$0xf]
    %v146 = vld [vmem:[#allocation8 + $0x2c] sm:$0xf]
    %v147 = vld [vmem:[#allocation8 + $0x30] sm:$0xf]
    %v148 = vld [vmem:[#allocation8 + $0x34] sm:$0xf]
    %v149 = vld [vmem:[#allocation8 + $0x38] sm:$0xf]
    %v150 = vld [vmem:[#allocation8 + $0x3c] sm:$0xf]
    %v151 = vld [vmem:[%s4] sm:$0x1]
    %v153 = vperm.slane %v151, 0
    %v157 = vunpack.c.l.b16 %v133
    %v158 = vunpack.c.l.b16 %v134
    %v159 = vpack.c.b16 %v158, %v157
    %v177 = vunpack.c.l.b16 %v135
    %v178 = vunpack.c.l.b16 %v136
    %v179 = vunpack.c.l.b16 %v137
    %v180 = vunpack.c.l.b16 %v138
    %v181 = vunpack.c.l.b16 %v139
    %v182 = vunpack.c.l.b16 %v140
    %v183 = vunpack.c.l.b16 %v141
    %v184 = vunpack.c.l.b16 %v142
    %v185 = vunpack.c.l.b16 %v143
    %v186 = vunpack.c.l.b16 %v144
    %v187 = vunpack.c.l.b16 %v145
    %v188 = vunpack.c.l.b16 %v146
    %v189 = vunpack.c.l.b16 %v147
    %v190 = vunpack.c.l.b16 %v148
    %v191 = vunpack.c.l.b16 %v149
    %v192 = vunpack.c.l.b16 %v150
    %v193 = vpack.c.b16 %v178, %v177
    %v194 = vpack.c.b16 %v180, %v179
    %v195 = vpack.c.b16 %v182, %v181
    %v196 = vpack.c.b16 %v184, %v183
    %v197 = vpack.c.b16 %v186, %v185
    %v198 = vpack.c.b16 %v188, %v187
    %v199 = vpack.c.b16 %v190, %v189
    %v200 = vpack.c.b16 %v192, %v191
    %209 = vmatpush.bf16.msra.mxu0 %v200
    %210 = vmatpush.bf16.msra.mxu0 %v199
    %211 = vmatpush.bf16.msra.mxu0 %v198
    %212 = vmatpush.bf16.msra.mxu0 %v197
    %213 = vmatpush.bf16.msra.mxu0 %v196
    %214 = vmatpush.bf16.msra.mxu0 %v195
    %215 = vmatpush.bf16.msra.mxu0 %v194
    %216 = vmatpush.bf16.msra.mxu0 %v193
    %217 = vmatmul.bf16.gmra.mxu0 %v159
    %v218 = vpop.f32.mrf.mxu0
    %v219 = vadd.f32 %v153, %v218
    %v220 = vpop.f32.mrf.mxu0
    %v221 = vadd.f32 %v153, %v220
    %222 = vdwg.mxu0
    %223 = vst [vmem:[#allocation9] sm:$0xff] %v219
    %224 = vst [vmem:[#allocation9 + $0x8] sm:$0xff] %v221
    // Predicated region
    $region38: #{tpu_custom_call.1} parent=1 // pred_check
      _
    $region39: #{tpu_custom_call.1} parent=1 // pred_check_branch
      %226 = sbr.rel (0) target = $region41
    $region40: #{tpu_custom_call.1} parent=1 // pred_region
      %228 = vsyncadd [#allocation5], 0
      %s229 = sshll.u32 [#allocation9], 4
      %s230 = int_to_ptr.vmem [resolvable:$true] %s229
      %s231 = sshll.u32 %s5, 4
      %s232 = int_to_ptr.hbm [resolvable:$true] %s231
      %237 = dma.vmem_to_hbm [thread:$0]  %s230, 256, %s232, [#allocation5], 128, 128, 8
    $region41: #{tpu_custom_call.1} parent=1 // pred_fallthru
      _
    // Predicated region
    $region42: #{tpu_custom_call.1} parent=1 // pred_check
      _
    $region43: #{tpu_custom_call.1} parent=1 // pred_check_branch
      %239 = sbr.rel (0) target = $region45
    $region44: #{tpu_custom_call.1} parent=1 // pred_region
      %241 = dma.done [#allocation5], 256
    $region45: #{tpu_custom_call.1} parent=1 // pred_fallthru
      _
    %242 = vsyncpa [#allocation4], 1
    %243 = vsyncpa [#allocation7], 1
    %244 = vsyncpa [#allocation5], 1

</llo_original>
